<compile_context>
chip_gen: v7x
topology: tpu7x:2x2x1
jax: 0.10.0
libtpu: 0.0.40
codegen_flags: <defaults>
</compile_context>

<pallas_src>
import functools

import jax
import jax.numpy as jnp
from jax import lax
from jax.experimental import pallas as pl
from jax.experimental.pallas import tpu as pltpu


def _round_up(x, m):
    return ((x + m - 1) // m) * m


def _pick_tile(total, candidates):
    for c in candidates:
        if total % c == 0:
            return c
    return total


# ----------------------------------------------------------------------------
# Kernel A: 3x3 conv as ONE deep-K matmul per column tile + one-pass BN stats
# ----------------------------------------------------------------------------
def _conv_stats_kernel(x_ref, w_ref, mask_ref, y_ref, sum_ref, sq_ref,
                       slab_ref, *, shift_offsets, c_in_p):
    # x_ref    : (1, 1, C_in_p, TC+HALO) bf16  overlapping input window
    # w_ref    : (C_out, 9*C_in_p)       bf16  taps stacked along K
    # mask_ref : (1, TC)                 f32   1.0 on valid output columns
    # y_ref    : (1, C_out, TC)          bf16  masked conv output tile
    # sum_ref  : (1, 1, C_out, 1)        f32   per-(sample, tile) masked sum
    # sq_ref   : (1, 1, C_out, 1)        f32   per-(sample, tile) masked sumsq
    # slab_ref : (9*C_in_p, TC)          bf16  im2col scratch (VMEM)
    tc = y_ref.shape[2]

    # im2col: materialize each shifted window exactly once (static slices).
    for k, off in enumerate(shift_offsets):
        slab_ref[k * c_in_p:(k + 1) * c_in_p, :] = x_ref[0, 0, :, off:off + tc]

    # Single MXU matmul, K = 9*C_in_p, f32 accumulation.
    acc = jnp.dot(w_ref[...], slab_ref[...],
                  preferred_element_type=jnp.float32)        # (C_out, TC)

    m = mask_ref[...]                                         # (1, TC)
    ym = acc * m                                              # junk cols -> 0
    y_ref[0] = ym.astype(y_ref.dtype)
    sum_ref[0, 0] = jnp.sum(ym, axis=1, keepdims=True)
    sq_ref[0, 0] = jnp.sum(ym * ym, axis=1, keepdims=True)    # mask is 0/1


# ----------------------------------------------------------------------------
# Kernel B: normalize + affine (+ ReLU), lane-dense elementwise pass
# ----------------------------------------------------------------------------
def _bn_relu_kernel(y_ref, scale_ref, shift_ref, o_ref, *, apply_relu):
    z = y_ref[0].astype(jnp.float32) * scale_ref[...] + shift_ref[...]
    if apply_relu:
        z = jnp.maximum(z, 0.0)
    o_ref[0] = z.astype(o_ref.dtype)


def _vmem_limit_bytes_a(c_in_p, c_out, k9, tin_tile, tc):
    bpe = 2  # bf16
    per_buf = (c_in_p * tin_tile * bpe     # x window
               + c_out * k9 * bpe          # weights
               + tc * 4                    # mask
               + c_out * tc * bpe          # y tile
               + 2 * c_out * 4)            # sum + sq
    est = 2 * per_buf + k9 * tc * bpe      # double-buffered + im2col scratch
    return int(min(32 << 20, max(16 << 20, 2 * est)))


# ----------------------------------------------------------------------------
# One Conv2d(3x3, s=1, p=1, reflect) + BatchNorm2d (training stats) + ReLU
# ----------------------------------------------------------------------------
@functools.partial(jax.jit,
                   static_argnames=("eps", "apply_relu", "mxu_dtype",
                                    "out_dtype"))
def conv_bn_relu_layer(x, w, gamma, beta, *, eps=1e-5, apply_relu=True,
                       mxu_dtype=jnp.bfloat16, out_dtype=jnp.float32):
    """x: (N, C_in, H, W) -> (N, C_out, H, W) in `out_dtype`."""
    N, C_in, H, W = x.shape
    C_out = w.shape[0]
    assert H >= 2 and W >= 2, "reflect padding needs H, W >= 2"

    Wp = W + 2
    P = (H + 2) * Wp                          # flattened padded image length
    max_off = 2 * Wp + 2                      # largest flat tap shift (dy=dx=2)
    Tout = _round_up(P, 512)                  # lane-dense, never <512 tiles
    HALO = _round_up(max_off, 128)
    C_in_p = _round_up(C_in, 8)
    K9 = 9 * C_in_p

    TC_a = _pick_tile(Tout, (1024, 512))      # Kernel A column tile
    TIN_TILE = TC_a + HALO
    num_tiles = Tout // TC_a

    # ---- host-side prep (XLA data movement) ---------------------------------
    xp = jnp.pad(x, ((0, 0), (0, 0), (1, 1), (1, 1)), mode="reflect")
    xp = xp.reshape(N, C_in, P)
    xp = jnp.pad(xp, ((0, 0), (0, C_in_p - C_in), (0, Tout + HALO - P)))
    xp = xp.astype(mxu_dtype)
    # overlapping column windows -> (N, num_tiles, C_in_p, TC_a + HALO)
    idx = (jnp.arange(num_tiles, dtype=jnp.int32) * TC_a)[:, None] \
        + jnp.arange(TIN_TILE, dtype=jnp.int32)[None, :]
    x_tiles = jnp.take(xp, idx, axis=2)                 # (N, C_in_p, T, Tin)
    x_tiles = jnp.transpose(x_tiles, (0, 2, 1, 3))      # (N, T, C_in_p, Tin)

    # weights: (C_out, C_in, 3, 3) -> (C_out, 9*C_in_p), taps dy-major
    w_k = jnp.transpose(w, (0, 2, 3, 1))                # (C_out, 3, 3, C_in)
    w_k = jnp.pad(w_k, ((0, 0), (0, 0), (0, 0), (0, C_in_p - C_in)))
    w2 = w_k.reshape(C_out, K9).astype(mxu_dtype)

    col = jnp.arange(Tout, dtype=jnp.int32)
    valid = ((col // Wp) < H) & ((col % Wp) < W) & (col < P)
    mask = valid.astype(jnp.float32).reshape(1, Tout)

    shift_offsets = tuple(dy * Wp + dx for dy in range(3) for dx in range(3))

    # ---- kernel A: conv + one-pass BN stats ---------------------------------
    # NOTE: weights are grid-invariant; Pallas re-uses the block (same index
    # every step) so it is only DMA'd once; the spare pipeline buffer is tiny.
    y, s_sum, s_sq = pl.pallas_call(
        functools.partial(_conv_stats_kernel, shift_offsets=shift_offsets,
                          c_in_p=C_in_p),
        grid=(N, num_tiles),
        in_specs=[
            pl.BlockSpec((1, 1, C_in_p, TIN_TILE), lambda n, t: (n, t, 0, 0)),
            pl.BlockSpec((C_out, K9), lambda n, t: (0, 0)),
            pl.BlockSpec((1, TC_a), lambda n, t: (0, t)),
        ],
        out_specs=[
            pl.BlockSpec((1, C_out, TC_a), lambda n, t: (n, 0, t)),
            pl.BlockSpec((1, 1, C_out, 1), lambda n, t: (n, t, 0, 0)),
            pl.BlockSpec((1, 1, C_out, 1), lambda n, t: (n, t, 0, 0)),
        ],
        out_shape=[
            jax.ShapeDtypeStruct((N, C_out, Tout), mxu_dtype),       # bf16 y
            jax.ShapeDtypeStruct((N, num_tiles, C_out, 1), jnp.float32),
            jax.ShapeDtypeStruct((N, num_tiles, C_out, 1), jnp.float32),
        ],
        scratch_shapes=[pltpu.VMEM((K9, TC_a), mxu_dtype)],
        compiler_params=pltpu.CompilerParams(
            dimension_semantics=("parallel", "parallel"),
            vmem_limit_bytes=_vmem_limit_bytes_a(C_in_p, C_out, K9,
                                                 TIN_TILE, TC_a)),
    )(x_tiles, w2, mask)

    # ---- tiny host math: batch mean / biased var -> scale & shift -----------
    # TODO(synk): one-pass E[y^2]-E[y]^2 can lose precision for badly-scaled
    # activations; acceptable for typical normalized inputs.
    cnt = float(N * H * W)
    mean = jnp.sum(s_sum, axis=(0, 1)) / cnt                        # (C_out,1)
    var = jnp.maximum(jnp.sum(s_sq, axis=(0, 1)) / cnt - mean * mean, 0.0)
    scale = gamma.reshape(C_out, 1).astype(jnp.float32) * lax.rsqrt(var + eps)
    shift = beta.reshape(C_out, 1).astype(jnp.float32) - mean * scale

    # ---- kernel B: normalize + affine (+ ReLU) -------------------------------
    TC_b = _pick_tile(Tout, (2048, 1024, 512))          # never below 512 lanes
    out_flat = pl.pallas_call(
        functools.partial(_bn_relu_kernel, apply_relu=apply_relu),
        grid=(N, Tout // TC_b),
        in_specs=[
            pl.BlockSpec((1, C_out, TC_b), lambda n, t: (n, 0, t)),
            pl.BlockSpec((C_out, 1), lambda n, t: (0, 0)),
            pl.BlockSpec((C_out, 1), lambda n, t: (0, 0)),
        ],
        out_specs=pl.BlockSpec((1, C_out, TC_b), lambda n, t: (n, 0, t)),
        out_shape=jax.ShapeDtypeStruct((N, C_out, Tout), out_dtype),
        compiler_params=pltpu.CompilerParams(
            dimension_semantics=("parallel", "parallel")),
    )(y, scale, shift)

    # ---- back to NCHW (drop halo / junk columns) ------------------------------
    out = out_flat[:, :, :P].reshape(N, C_out, H + 2, Wp)[:, :, :H, :W]
    return out


# ----------------------------------------------------------------------------
# Module wrapper mirroring ConvLayer(nkernels, norm='batch', k=3, s=1, p=1, ...)
# ----------------------------------------------------------------------------
class ConvLayerPallas:
    def __init__(self, nkernels, norm="batch", k=3, s=1, p=1, n_groups=4,
                 last_relu=True, padding_mode="reflect", key=None,
                 mxu_dtype=jnp.bfloat16):
        # TODO(synk): norm='instance' / 'group' variants not implemented.
        assert norm == "batch", "only norm='batch' implemented"
        assert (k, s, p) == (3, 1, 1) and padding_mode == "reflect"
        if key is None:
            key = jax.random.PRNGKey(0)
        self.nkernels = list(nkernels)
        self.mxu_dtype = mxu_dtype
        # (w, b, gamma, beta) per conv.  b is kept for interface parity with
        # nn.Conv2d but is mathematically cancelled by train-mode BatchNorm,
        # so the kernel never reads it.
        # TODO(synk): eval-mode BatchNorm (running stats) not implemented.
        self.params = []
        self.relu_flags = []
        n_layers = len(nkernels) - 1
        for i in range(n_layers):
            cin, cout = nkernels[i], nkernels[i + 1]
            key, kw, kb = jax.random.split(key, 3)
            fan_in = cin * k * k
            bound = 1.0 / (fan_in ** 0.5)      # PyTorch Conv2d default init
            w = jax.random.uniform(kw, (cout, cin, k, k), jnp.float32,
                                   -bound, bound)
            b = jax.random.uniform(kb, (cout,), jnp.float32, -bound, bound)
            gamma = jnp.ones((cout,), jnp.float32)   # BatchNorm2d init
            beta = jnp.zeros((cout,), jnp.float32)
            self.params.append((w, b, gamma, beta))
            self.relu_flags.append(bool(last_relu) or (i < n_layers - 1))

    def __call__(self, x):
        y = x
        n_layers = len(self.params)
        for i, ((w, _b, g, bt), relu_flag) in enumerate(
                zip(self.params, self.relu_flags)):
            is_last = (i == n_layers - 1)
            # intermediate layers hand off bf16 (next layer casts to bf16
            # anyway); final layer returns f32.
            out_dtype = jnp.float32 if is_last else self.mxu_dtype
            y = conv_bn_relu_layer(y, w, g, bt, apply_relu=relu_flag,
                                   mxu_dtype=self.mxu_dtype,
                                   out_dtype=out_dtype)
        return y


# ----------------------------------------------------------------------------
# Pure-JAX reference (lax.conv).  Conv operands are rounded to the MXU dtype so
# the comparison isolates kernel bugs rather than bf16 rounding of the inputs.
# ----------------------------------------------------------------------------
def reference_forward(x, params, relu_flags, eps=1e-5, mxu_dtype=jnp.bfloat16):
    y = x.astype(jnp.float32)
    for (w, b, g, bt), relu_flag in zip(params, relu_flags):
        yb = y.astype(mxu_dtype).astype(jnp.float32)
        wb = w.astype(mxu_dtype).astype(jnp.float32)
        yp = jnp.pad(yb, ((0, 0), (0, 0), (1, 1), (1, 1)), mode="reflect")
        y = lax.conv_general_dilated(
            yp, wb, window_strides=(1, 1), padding="VALID",
            dimension_numbers=("NCHW", "OIHW", "NCHW"))
        y = y + b[None, :, None, None]
        mean = jnp.mean(y, axis=(0, 2, 3), keepdims=True)
        var = jnp.mean((y - mean) ** 2, axis=(0, 2, 3), keepdims=True)
        y = (y - mean) * lax.rsqrt(var + eps)
        y = y * g[None, :, None, None] + bt[None, :, None, None]
        if relu_flag:
            y = jnp.maximum(y, 0.0)
    return y


if __name__ == "__main__":
    key = jax.random.PRNGKey(0)
    k_in, k_mod = jax.random.split(key)

    # Small shapes consistent with the module: NCHW input, nkernels=[4, 8, 8]
    x = jax.random.normal(k_in, (2, 4, 16, 16), dtype=jnp.float32)

    layer = ConvLayerPallas(nkernels=[4, 8, 8], norm="batch", k=3, s=1, p=1,
                            last_relu=True, padding_mode="reflect", key=k_mod)

    out = jax.block_until_ready(layer(x))
    ref = jax.block_until_ready(reference_forward(x, layer.params,
                                                  layer.relu_flags))

    assert out.shape == (2, 8, 16, 16), out.shape
    err = float(jnp.max(jnp.abs(out.astype(jnp.float32) - ref)))
    # bf16 intermediate activations (kernel) vs f32 intermediates (reference)
    # account for the residual difference; real indexing/mask bugs give O(1).
    assert err < 5e-2, f"mismatch vs reference: max abs err = {err}"

    print("KERNEL_OK")
</pallas_src>

<mosaic_0001>
module attributes {stable_mosaic.version = 11 : i64} {
  func.func @_conv_stats_kernel(%arg0: i32, %arg1: i32, %arg2: memref<1x1x8x640xbf16, #tpu.memory_space<vmem>>, %arg3: memref<8x72xbf16, #tpu.memory_space<vmem>>, %arg4: memref<1x512xf32, #tpu.memory_space<vmem>>, %arg5: memref<1x8x512xbf16, #tpu.memory_space<vmem>>, %arg6: memref<1x1x8x1xf32, #tpu.memory_space<vmem>>, %arg7: memref<1x1x8x1xf32, #tpu.memory_space<vmem>>, %arg8: memref<72x512xbf16, #tpu.memory_space<vmem>>) attributes {dimension_semantics = [#tpu.dimension_semantics<parallel>, #tpu.dimension_semantics<parallel>], iteration_bounds = array<i64: 2, 1>, scalar_prefetch = 0 : i64, scratch_operands = 1 : i64, tpu.core_type = #tpu.core_type<tc>, window_params = [{transform_indices = @transform_0, window_bounds = array<i64: 1, 1, 8, 640>}, {pipeline_mode = #tpu.pipeline_mode<synchronous>, transform_indices = @transform_1, window_bounds = array<i64: 8, 72>}, {transform_indices = @transform_2, window_bounds = array<i64: 1, 512>}, {transform_indices = @transform_3, window_bounds = array<i64: 1, 8, 512>}, {transform_indices = @transform_4, window_bounds = array<i64: 1, 1, 8, 1>}, {transform_indices = @transform_5, window_bounds = array<i64: 1, 1, 8, 1>}]} {
    %c0 = arith.constant 0 : index
    %c0_0 = arith.constant 0 : index
    %c0_1 = arith.constant 0 : index
    %c0_2 = arith.constant 0 : index
    %0 = vector.load %arg2[%c0, %c0_0, %c0_1, %c0_2] : memref<1x1x8x640xbf16, #tpu.memory_space<vmem>>, vector<1x1x8x512xbf16>
    %1 = vector.shape_cast %0 : vector<1x1x8x512xbf16> to vector<8x512xbf16>
    %c0_3 = arith.constant 0 : index
    %c0_4 = arith.constant 0 : index
    %2 = vector.load %arg8[%c0_3, %c0_4] : memref<72x512xbf16, #tpu.memory_space<vmem>>, vector<8x512xbf16>
    tpu.vector_store %arg8[%c0_3, %c0_4], %1 {strides = array<i32>} : memref<72x512xbf16, #tpu.memory_space<vmem>>, vector<8x512xbf16>,
    %c0_5 = arith.constant 0 : index
    %c0_6 = arith.constant 0 : index
    %c0_7 = arith.constant 0 : index
    %c1 = arith.constant 1 : index
    %3 = vector.load %arg2[%c0_5, %c0_6, %c0_7, %c1] : memref<1x1x8x640xbf16, #tpu.memory_space<vmem>>, vector<1x1x8x512xbf16>
    %4 = vector.shape_cast %3 : vector<1x1x8x512xbf16> to vector<8x512xbf16>
    %c8 = arith.constant 8 : index
    %c0_8 = arith.constant 0 : index
    %5 = vector.load %arg8[%c8, %c0_8] : memref<72x512xbf16, #tpu.memory_space<vmem>>, vector<8x512xbf16>
    tpu.vector_store %arg8[%c8, %c0_8], %4 {strides = array<i32>} : memref<72x512xbf16, #tpu.memory_space<vmem>>, vector<8x512xbf16>,
    %c0_9 = arith.constant 0 : index
    %c0_10 = arith.constant 0 : index
    %c0_11 = arith.constant 0 : index
    %c2 = arith.constant 2 : index
    %6 = vector.load %arg2[%c0_9, %c0_10, %c0_11, %c2] : memref<1x1x8x640xbf16, #tpu.memory_space<vmem>>, vector<1x1x8x512xbf16>
    %7 = vector.shape_cast %6 : vector<1x1x8x512xbf16> to vector<8x512xbf16>
    %c16 = arith.constant 16 : index
    %c0_12 = arith.constant 0 : index
    %8 = vector.load %arg8[%c16, %c0_12] : memref<72x512xbf16, #tpu.memory_space<vmem>>, vector<8x512xbf16>
    tpu.vector_store %arg8[%c16, %c0_12], %7 {strides = array<i32>} : memref<72x512xbf16, #tpu.memory_space<vmem>>, vector<8x512xbf16>,
    %c0_13 = arith.constant 0 : index
    %c0_14 = arith.constant 0 : index
    %c0_15 = arith.constant 0 : index
    %c18 = arith.constant 18 : index
    %9 = vector.load %arg2[%c0_13, %c0_14, %c0_15, %c18] : memref<1x1x8x640xbf16, #tpu.memory_space<vmem>>, vector<1x1x8x512xbf16>
    %10 = vector.shape_cast %9 : vector<1x1x8x512xbf16> to vector<8x512xbf16>
    %c24 = arith.constant 24 : index
    %c0_16 = arith.constant 0 : index
    %11 = vector.load %arg8[%c24, %c0_16] : memref<72x512xbf16, #tpu.memory_space<vmem>>, vector<8x512xbf16>
    tpu.vector_store %arg8[%c24, %c0_16], %10 {strides = array<i32>} : memref<72x512xbf16, #tpu.memory_space<vmem>>, vector<8x512xbf16>,
    %c0_17 = arith.constant 0 : index
    %c0_18 = arith.constant 0 : index
    %c0_19 = arith.constant 0 : index
    %c19 = arith.constant 19 : index
    %12 = vector.load %arg2[%c0_17, %c0_18, %c0_19, %c19] : memref<1x1x8x640xbf16, #tpu.memory_space<vmem>>, vector<1x1x8x512xbf16>
    %13 = vector.shape_cast %12 : vector<1x1x8x512xbf16> to vector<8x512xbf16>
    %c32 = arith.constant 32 : index
    %c0_20 = arith.constant 0 : index
    %14 = vector.load %arg8[%c32, %c0_20] : memref<72x512xbf16, #tpu.memory_space<vmem>>, vector<8x512xbf16>
    tpu.vector_store %arg8[%c32, %c0_20], %13 {strides = array<i32>} : memref<72x512xbf16, #tpu.memory_space<vmem>>, vector<8x512xbf16>,
    %c0_21 = arith.constant 0 : index
    %c0_22 = arith.constant 0 : index
    %c0_23 = arith.constant 0 : index
    %c20 = arith.constant 20 : index
    %15 = vector.load %arg2[%c0_21, %c0_22, %c0_23, %c20] : memref<1x1x8x640xbf16, #tpu.memory_space<vmem>>, vector<1x1x8x512xbf16>
    %16 = vector.shape_cast %15 : vector<1x1x8x512xbf16> to vector<8x512xbf16>
    %c40 = arith.constant 40 : index
    %c0_24 = arith.constant 0 : index
    %17 = vector.load %arg8[%c40, %c0_24] : memref<72x512xbf16, #tpu.memory_space<vmem>>, vector<8x512xbf16>
    tpu.vector_store %arg8[%c40, %c0_24], %16 {strides = array<i32>} : memref<72x512xbf16, #tpu.memory_space<vmem>>, vector<8x512xbf16>,
    %c0_25 = arith.constant 0 : index
    %c0_26 = arith.constant 0 : index
    %c0_27 = arith.constant 0 : index
    %c36 = arith.constant 36 : index
    %18 = vector.load %arg2[%c0_25, %c0_26, %c0_27, %c36] : memref<1x1x8x640xbf16, #tpu.memory_space<vmem>>, vector<1x1x8x512xbf16>
    %19 = vector.shape_cast %18 : vector<1x1x8x512xbf16> to vector<8x512xbf16>
    %c48 = arith.constant 48 : index
    %c0_28 = arith.constant 0 : index
    %20 = vector.load %arg8[%c48, %c0_28] : memref<72x512xbf16, #tpu.memory_space<vmem>>, vector<8x512xbf16>
    tpu.vector_store %arg8[%c48, %c0_28], %19 {strides = array<i32>} : memref<72x512xbf16, #tpu.memory_space<vmem>>, vector<8x512xbf16>,
    %c0_29 = arith.constant 0 : index
    %c0_30 = arith.constant 0 : index
    %c0_31 = arith.constant 0 : index
    %c37 = arith.constant 37 : index
    %21 = vector.load %arg2[%c0_29, %c0_30, %c0_31, %c37] : memref<1x1x8x640xbf16, #tpu.memory_space<vmem>>, vector<1x1x8x512xbf16>
    %22 = vector.shape_cast %21 : vector<1x1x8x512xbf16> to vector<8x512xbf16>
    %c56 = arith.constant 56 : index
    %c0_32 = arith.constant 0 : index
    %23 = vector.load %arg8[%c56, %c0_32] : memref<72x512xbf16, #tpu.memory_space<vmem>>, vector<8x512xbf16>
    tpu.vector_store %arg8[%c56, %c0_32], %22 {strides = array<i32>} : memref<72x512xbf16, #tpu.memory_space<vmem>>, vector<8x512xbf16>,
    %c0_33 = arith.constant 0 : index
    %c0_34 = arith.constant 0 : index
    %c0_35 = arith.constant 0 : index
    %c38 = arith.constant 38 : index
    %24 = vector.load %arg2[%c0_33, %c0_34, %c0_35, %c38] : memref<1x1x8x640xbf16, #tpu.memory_space<vmem>>, vector<1x1x8x512xbf16>
    %25 = vector.shape_cast %24 : vector<1x1x8x512xbf16> to vector<8x512xbf16>
    %c64 = arith.constant 64 : index
    %c0_36 = arith.constant 0 : index
    %26 = vector.load %arg8[%c64, %c0_36] : memref<72x512xbf16, #tpu.memory_space<vmem>>, vector<8x512xbf16>
    tpu.vector_store %arg8[%c64, %c0_36], %25 {strides = array<i32>} : memref<72x512xbf16, #tpu.memory_space<vmem>>, vector<8x512xbf16>,
    %c0_37 = arith.constant 0 : index
    %c0_38 = arith.constant 0 : index
    %27 = vector.load %arg3[%c0_37, %c0_38] : memref<8x72xbf16, #tpu.memory_space<vmem>>, vector<8x72xbf16>
    %c0_39 = arith.constant 0 : index
    %c0_40 = arith.constant 0 : index
    %28 = vector.load %arg8[%c0_39, %c0_40] : memref<72x512xbf16, #tpu.memory_space<vmem>>, vector<72x512xbf16>
    %cst = arith.constant dense<0.000000e+00> : vector<8x512xf32>
    %29 = tpu.matmul %27, %28, %cst {dimension_numbers = #tpu.dot_dimension_numbers<[1], [0], [0], [1], [0, 0, 1, 1], [], []>} : vector<8x72xbf16>, vector<72x512xbf16>, vector<8x512xf32> -> vector<8x512xf32>
    %c0_41 = arith.constant 0 : index
    %c0_42 = arith.constant 0 : index
    %30 = vector.load %arg4[%c0_41, %c0_42] : memref<1x512xf32, #tpu.memory_space<vmem>>, vector<1x512xf32>
    %31 = vector.broadcast %30 : vector<1x512xf32> to vector<8x512xf32>
    %32 = arith.mulf %29, %31 : vector<8x512xf32>
    %33 = arith.truncf %32 : vector<8x512xf32> to vector<8x512xbf16>
    %c0_43 = arith.constant 0 : index
    %c0_44 = arith.constant 0 : index
    %c0_45 = arith.constant 0 : index
    %34 = vector.load %arg5[%c0_43, %c0_44, %c0_45] : memref<1x8x512xbf16, #tpu.memory_space<vmem>>, vector<1x8x512xbf16>
    %35 = vector.shape_cast %34 : vector<1x8x512xbf16> to vector<8x512xbf16>
    %36 = vector.shape_cast %33 : vector<8x512xbf16> to vector<1x8x512xbf16>
    tpu.vector_store %arg5[%c0_43, %c0_44, %c0_45], %36 {strides = array<i32>} : memref<1x8x512xbf16, #tpu.memory_space<vmem>>, vector<1x8x512xbf16>,
    %cst_46 = arith.constant dense<0.000000e+00> : vector<8xf32>
    %37 = vector.multi_reduction <add>, %32, %cst_46 [1] : vector<8x512xf32> to vector<8xf32>
    %38 = vector.shape_cast %37 : vector<8xf32> to vector<8x1xf32>
    %c0_47 = arith.constant 0 : index
    %c0_48 = arith.constant 0 : index
    %c0_49 = arith.constant 0 : index
    %c0_50 = arith.constant 0 : index
    %39 = vector.load %arg6[%c0_47, %c0_48, %c0_49, %c0_50] : memref<1x1x8x1xf32, #tpu.memory_space<vmem>>, vector<1x1x8x1xf32>
    %40 = vector.shape_cast %39 : vector<1x1x8x1xf32> to vector<8x1xf32>
    %41 = vector.shape_cast %38 : vector<8x1xf32> to vector<1x1x8x1xf32>
    tpu.vector_store %arg6[%c0_47, %c0_48, %c0_49, %c0_50], %41 {strides = array<i32>} : memref<1x1x8x1xf32, #tpu.memory_space<vmem>>, vector<1x1x8x1xf32>,
    %42 = arith.mulf %32, %32 : vector<8x512xf32>
    %cst_51 = arith.constant dense<0.000000e+00> : vector<8xf32>
    %43 = vector.multi_reduction <add>, %42, %cst_51 [1] : vector<8x512xf32> to vector<8xf32>
    %44 = vector.shape_cast %43 : vector<8xf32> to vector<8x1xf32>
    %c0_52 = arith.constant 0 : index
    %c0_53 = arith.constant 0 : index
    %c0_54 = arith.constant 0 : index
    %c0_55 = arith.constant 0 : index
    %45 = vector.load %arg7[%c0_52, %c0_53, %c0_54, %c0_55] : memref<1x1x8x1xf32, #tpu.memory_space<vmem>>, vector<1x1x8x1xf32>
    %46 = vector.shape_cast %45 : vector<1x1x8x1xf32> to vector<8x1xf32>
    %47 = vector.shape_cast %44 : vector<8x1xf32> to vector<1x1x8x1xf32>
    tpu.vector_store %arg7[%c0_52, %c0_53, %c0_54, %c0_55], %47 {strides = array<i32>} : memref<1x1x8x1xf32, #tpu.memory_space<vmem>>, vector<1x1x8x1xf32>,
    return
  }
  func.func @transform_0(%arg0: i32, %arg1: i32) -> (i32, i32, i32, i32) {
    %c0_i32 = arith.constant 0 : i32
    %c0_i32_0 = arith.constant 0 : i32
    %c0_i32_1 = arith.constant 0 : i32
    return %arg0, %arg1, %c0_i32, %c0_i32_0 : i32, i32, i32, i32
  }
  func.func @transform_1(%arg0: i32, %arg1: i32) -> (i32, i32) {
    %c0_i32 = arith.constant 0 : i32
    %c0_i32_0 = arith.constant 0 : i32
    %c0_i32_1 = arith.constant 0 : i32
    return %c0_i32, %c0_i32_0 : i32, i32
  }
  func.func @transform_2(%arg0: i32, %arg1: i32) -> (i32, i32) {
    %c0_i32 = arith.constant 0 : i32
    %c0_i32_0 = arith.constant 0 : i32
    return %c0_i32, %arg1 : i32, i32
  }
  func.func @transform_3(%arg0: i32, %arg1: i32) -> (i32, i32, i32) {
    %c0_i32 = arith.constant 0 : i32
    %c0_i32_0 = arith.constant 0 : i32
    return %arg0, %c0_i32, %arg1 : i32, i32, i32
  }
  func.func @transform_4(%arg0: i32, %arg1: i32) -> (i32, i32, i32, i32) {
    %c0_i32 = arith.constant 0 : i32
    %c0_i32_0 = arith.constant 0 : i32
    %c0_i32_1 = arith.constant 0 : i32
    return %arg0, %arg1, %c0_i32, %c0_i32_0 : i32, i32, i32, i32
  }
  func.func @transform_5(%arg0: i32, %arg1: i32) -> (i32, i32, i32, i32) {
    %c0_i32 = arith.constant 0 : i32
    %c0_i32_0 = arith.constant 0 : i32
    %c0_i32_1 = arith.constant 0 : i32
    return %arg0, %arg1, %c0_i32, %c0_i32_0 : i32, i32, i32, i32
  }
}

module attributes {stable_mosaic.version = 11 : i64} {
  func.func @_bn_relu_kernel(%arg0: i32, %arg1: i32, %arg2: memref<1x8x512xbf16, #tpu.memory_space<vmem>>, %arg3: memref<8x1xf32, #tpu.memory_space<vmem>>, %arg4: memref<8x1xf32, #tpu.memory_space<vmem>>, %arg5: memref<1x8x512xbf16, #tpu.memory_space<vmem>>) attributes {dimension_semantics = [#tpu.dimension_semantics<parallel>, #tpu.dimension_semantics<parallel>], iteration_bounds = array<i64: 2, 1>, scalar_prefetch = 0 : i64, scratch_operands = 0 : i64, tpu.core_type = #tpu.core_type<tc>, window_params = [{transform_indices = @transform_0, window_bounds = array<i64: 1, 8, 512>}, {pipeline_mode = #tpu.pipeline_mode<synchronous>, transform_indices = @transform_1, window_bounds = array<i64: 8, 1>}, {pipeline_mode = #tpu.pipeline_mode<synchronous>, transform_indices = @transform_2, window_bounds = array<i64: 8, 1>}, {transform_indices = @transform_3, window_bounds = array<i64: 1, 8, 512>}]} {
    %c0 = arith.constant 0 : index
    %c0_0 = arith.constant 0 : index
    %c0_1 = arith.constant 0 : index
    %0 = vector.load %arg2[%c0, %c0_0, %c0_1] : memref<1x8x512xbf16, #tpu.memory_space<vmem>>, vector<1x8x512xbf16>
    %1 = vector.shape_cast %0 : vector<1x8x512xbf16> to vector<8x512xbf16>
    %2 = arith.extf %1 : vector<8x512xbf16> to vector<8x512xf32>
    %c0_2 = arith.constant 0 : index
    %c0_3 = arith.constant 0 : index
    %3 = vector.load %arg3[%c0_2, %c0_3] : memref<8x1xf32, #tpu.memory_space<vmem>>, vector<8x1xf32>
    %4 = vector.broadcast %3 : vector<8x1xf32> to vector<8x512xf32>
    %5 = arith.mulf %2, %4 : vector<8x512xf32>
    %c0_4 = arith.constant 0 : index
    %c0_5 = arith.constant 0 : index
    %6 = vector.load %arg4[%c0_4, %c0_5] : memref<8x1xf32, #tpu.memory_space<vmem>>, vector<8x1xf32>
    %7 = vector.broadcast %6 : vector<8x1xf32> to vector<8x512xf32>
    %8 = arith.addf %5, %7 : vector<8x512xf32>
    %cst = arith.constant 0.000000e+00 : f32
    %9 = vector.broadcast %cst : f32 to vector<8x512xf32>
    %10 = arith.maximumf %8, %9 : vector<8x512xf32>
    %11 = arith.truncf %10 : vector<8x512xf32> to vector<8x512xbf16>
    %c0_6 = arith.constant 0 : index
    %c0_7 = arith.constant 0 : index
    %c0_8 = arith.constant 0 : index
    %12 = vector.load %arg5[%c0_6, %c0_7, %c0_8] : memref<1x8x512xbf16, #tpu.memory_space<vmem>>, vector<1x8x512xbf16>
    %13 = vector.shape_cast %12 : vector<1x8x512xbf16> to vector<8x512xbf16>
    %14 = vector.shape_cast %11 : vector<8x512xbf16> to vector<1x8x512xbf16>
    tpu.vector_store %arg5[%c0_6, %c0_7, %c0_8], %14 {strides = array<i32>} : memref<1x8x512xbf16, #tpu.memory_space<vmem>>, vector<1x8x512xbf16>,
    return
  }
  func.func @transform_0(%arg0: i32, %arg1: i32) -> (i32, i32, i32) {
    %c0_i32 = arith.constant 0 : i32
    %c0_i32_0 = arith.constant 0 : i32
    return %arg0, %c0_i32, %arg1 : i32, i32, i32
  }
  func.func @transform_1(%arg0: i32, %arg1: i32) -> (i32, i32) {
    %c0_i32 = arith.constant 0 : i32
    %c0_i32_0 = arith.constant 0 : i32
    %c0_i32_1 = arith.constant 0 : i32
    return %c0_i32, %c0_i32_0 : i32, i32
  }
  func.func @transform_2(%arg0: i32, %arg1: i32) -> (i32, i32) {
    %c0_i32 = arith.constant 0 : i32
    %c0_i32_0 = arith.constant 0 : i32
    %c0_i32_1 = arith.constant 0 : i32
    return %c0_i32, %c0_i32_0 : i32, i32
  }
  func.func @transform_3(%arg0: i32, %arg1: i32) -> (i32, i32, i32) {
    %c0_i32 = arith.constant 0 : i32
    %c0_i32_0 = arith.constant 0 : i32
    return %arg0, %c0_i32, %arg1 : i32, i32, i32
  }
}

</mosaic_0001>

<llo_original>
// kernel: conv_bn_relu_layer.3
$region0: #{conv_bn_relu_layer.3}
  #allocation0 [shape = 'u32[]', space=smem, size = 0x4, offset = 0x4, fixed_abs, tag = 'smem constant byte address 0x4 - core index']
  #allocation1 [shape = 'u32[144,128]{1,0:T(1,128)}', space=vmem, size = 0x12000, scoped, tag = 'internal scratch']
  %s0 = inlined_call_operand.vmem [shape: bf16[2,8,512], index: 0, kind: input, shape index: {}]
  %s1 = inlined_call_operand.vmem [shape: f32[8,1], index: 1, kind: input, shape index: {}]
  %s2 = inlined_call_operand.vmem [shape: f32[8,1], index: 2, kind: input, shape index: {}]
  %s3 = inlined_call_operand.vmem [shape: bf16[2,8,512], index: 3, kind: output, shape index: {}]
  %s4 = sld [smem:[#allocation0]]
  $region45: #{conv_bn_relu_layer.3} parent=0
    _
  %s6 = ssub.s32 1, %s4
  %s7 = scalar_select 0, %s6, %s4
  loop: start=0, step=1, limit=4
  $region2: #{conv_bn_relu_layer.3} parent=0 // loop_pre_header
    _
  $region3: #{conv_bn_relu_layer.3} parent=0 // loop_header
    %s9 = sphi 0, %s13
    %p10 = scmp.ge.s32.totalorder %s9, 4
    %s16 = sphi 0, %s28
    %s17 = sphi 0, %s24
    %s18 = sphi 0, %s16
    %s19 = sphi 0, %s17
    %s20 = sphi 0, %s18
    %s21 = sphi 0, %s19
    %s33 = sphi 0, %s35
    %s36 = sphi 0, %s33
    %s37 = sphi 0, %s36
    %s53 = sphi 0, %s37
    %s57 = sphi 0, %s57
    %s59 = sphi 0, %s57
    %s60 = sphi 0, %s59
    %s74 = sphi 0, %s60
    %s78 = sphi 0, %s78
    %s80 = sphi 0, %s78
    %s81 = sphi 0, %s80
    %s95 = sphi 0, %s81
    %s103 = sphi 0, %s105
    %s106 = sphi 0, %s103
    %s107 = sphi 0, %s106
    %s123 = sphi 0, %s107
  $region4: #{conv_bn_relu_layer.3} parent=0 // loop_header_branch
    %12 = sbr.rel (%p10) target = $region8
  $region5: #{conv_bn_relu_layer.3} parent=0 // loop_body
    %s14 = ssub.s32 %s9, 1
    %s15 = ssub.s32 %s9, 2
    %s22 = sadd.s32 1, %s17
    %p23 = scmp.ge.s32.totalorder %s22, 1
    %s24 = scalar_select %p23, 0, %s22
    %s25 = sadd.s32 1, %s16
    %s26 = scalar_select %p23, %s25, %s16
    %p27 = scmp.ge.s32.totalorder %s26, 2
    %s28 = scalar_select %p27, 0, %s26
    %s29 = ssub.s32 %s16, %s28
    %s30 = ssub.s32 %s17, %s24
    %s31 = sor.u32 %s29, %s30
    %p32 = scmp.eq.s32.totalorder %s31, 0
    %s34 = sadd.s32 %s33, 1
    %s35 = scalar_select %p32, %s33, %s34
    %p38 = pneg %p32
    %p39 = scmp.eq.s32.totalorder %s9, 1
    %p40 = por %p38, %p39
    %p41 = scmp.ne.s32.totalorder %s33, %s36
    %p42 = scmp.eq.s32.totalorder %s9, 0
    %p43 = por %p41, %p42
    %p44 = scmp.ne.s32.totalorder %s33, %s36
    %p45 = scmp.eq.s32.totalorder %s14, 1
    %p46 = por %p44, %p45
    %p47 = scmp.ne.s32.totalorder %s36, %s37
    %p48 = scmp.eq.s32.totalorder %s14, 0
    %p49 = por %p47, %p48
    %p50 = scmp.ne.s32.totalorder %s36, %s37
    %p51 = scmp.eq.s32.totalorder %s15, 1
    %p52 = por %p50, %p51
    %p54 = scmp.ne.s32.totalorder %s37, %s53
    %p55 = scmp.eq.s32.totalorder %s15, 0
    %p56 = por %p54, %p55
    %s58 = sadd.s32 %s57, 1
    %p61 = scmp.eq.s32.totalorder %s9, 1
    %p62 = scmp.ne.s32.totalorder %s57, %s59
    %p63 = scmp.eq.s32.totalorder %s9, 0
    %p64 = por %p62, %p63
    %p65 = scmp.ne.s32.totalorder %s57, %s59
    %p66 = scmp.eq.s32.totalorder %s14, 1
    %p67 = por %p65, %p66
    %p68 = scmp.ne.s32.totalorder %s59, %s60
    %p69 = scmp.eq.s32.totalorder %s14, 0
    %p70 = por %p68, %p69
    %p71 = scmp.ne.s32.totalorder %s59, %s60
    %p72 = scmp.eq.s32.totalorder %s15, 1
    %p73 = por %p71, %p72
    %p75 = scmp.ne.s32.totalorder %s60, %s74
    %p76 = scmp.eq.s32.totalorder %s15, 0
    %p77 = por %p75, %p76
    %s79 = sadd.s32 %s78, 1
    %p82 = scmp.eq.s32.totalorder %s9, 1
    %p83 = scmp.ne.s32.totalorder %s78, %s80
    %p84 = scmp.eq.s32.totalorder %s9, 0
    %p85 = por %p83, %p84
    %p86 = scmp.ne.s32.totalorder %s78, %s80
    %p87 = scmp.eq.s32.totalorder %s14, 1
    %p88 = por %p86, %p87
    %p89 = scmp.ne.s32.totalorder %s80, %s81
    %p90 = scmp.eq.s32.totalorder %s14, 0
    %p91 = por %p89, %p90
    %p92 = scmp.ne.s32.totalorder %s80, %s81
    %p93 = scmp.eq.s32.totalorder %s15, 1
    %p94 = por %p92, %p93
    %p96 = scmp.ne.s32.totalorder %s81, %s95
    %p97 = scmp.eq.s32.totalorder %s15, 0
    %p98 = por %p96, %p97
    %s99 = ssub.s32 %s16, %s28
    %s100 = ssub.s32 %s17, %s24
    %s101 = sor.u32 %s99, %s100
    %p102 = scmp.eq.s32.totalorder %s101, 0
    %s104 = sadd.s32 %s103, 1
    %s105 = scalar_select %p102, %s103, %s104
    %p108 = pneg %p102
    %p109 = scmp.eq.s32.totalorder %s9, 1
    %p110 = por %p108, %p109
    %p111 = scmp.ne.s32.totalorder %s103, %s106
    %p112 = scmp.eq.s32.totalorder %s9, 0
    %p113 = por %p111, %p112
    %p114 = scmp.ne.s32.totalorder %s103, %s106
    %p115 = scmp.eq.s32.totalorder %s14, 1
    %p116 = por %p114, %p115
    %p117 = scmp.ne.s32.totalorder %s106, %s107
    %p118 = scmp.eq.s32.totalorder %s14, 0
    %p119 = por %p117, %p118
    %p120 = scmp.ne.s32.totalorder %s106, %s107
    %p121 = scmp.eq.s32.totalorder %s15, 1
    %p122 = por %p120, %p121
    %p124 = scmp.ne.s32.totalorder %s107, %s123
    %p125 = scmp.eq.s32.totalorder %s15, 0
    %p126 = por %p124, %p125
    %p127 = scmp.le.s32.totalorder 1, %s9
    %p128 = scmp.lt.s32.totalorder %s9, 3
    %p129 = pnand %p127, %p128
    %p130 = pneg %p129
    // Predicated region
    $region9: #{conv_bn_relu_layer.3} parent=5 // pred_check
      _
    $region10: #{conv_bn_relu_layer.3} parent=5 // pred_check_branch
      %132 = sbr.rel (%p129) target = $region12
    $region11: #{conv_bn_relu_layer.3} parent=5 // pred_region
      %s133 = ssub.s32 %s9, 1
      // Predicated region
      $region13: #{conv_bn_relu_layer.3} parent=11 // pred_check
        %p134 = pneg %p70
      $region14: #{conv_bn_relu_layer.3} parent=11 // pred_check_branch
        %136 = sbr.rel (%p134) target = $region16
      $region15: #{conv_bn_relu_layer.3} parent=11 // pred_region
        _
      $region16: #{conv_bn_relu_layer.3} parent=11 // pred_fallthru
        _
      // Predicated region
      $region17: #{conv_bn_relu_layer.3} parent=11 // pred_check
        %p137 = pneg %p91
      $region18: #{conv_bn_relu_layer.3} parent=11 // pred_check_branch
        %139 = sbr.rel (%p137) target = $region20
      $region19: #{conv_bn_relu_layer.3} parent=11 // pred_region
        _
      $region20: #{conv_bn_relu_layer.3} parent=11 // pred_fallthru
        _
    $region12: #{conv_bn_relu_layer.3} parent=5 // pred_fallthru
      _
    %p140 = scmp.lt.s32.totalorder %s9, 2
    // Predicated region
    $region21: #{conv_bn_relu_layer.3} parent=5 // pred_check
      %p141 = pneg %p140
    $region22: #{conv_bn_relu_layer.3} parent=5 // pred_check_branch
      %143 = sbr.rel (%p141) target = $region24
    $region23: #{conv_bn_relu_layer.3} parent=5 // pred_region
      // Predicated region
      $region25: #{conv_bn_relu_layer.3} parent=23 // pred_check
        %p144 = pneg %p43
      $region26: #{conv_bn_relu_layer.3} parent=23 // pred_check_branch
        %146 = sbr.rel (%p144) target = $region28
      $region27: #{conv_bn_relu_layer.3} parent=23 // pred_region
        %s147 = smul.u32 4, %s17
        %p148 = scmp.lt.s32.totalorder %s16, 1
        %s149 = scalar_select %p148, %s16, 1
        %p150 = scmp.lt.s32.totalorder %s147, 3
        %s151 = scalar_select %p150, %s147, 3
        %s152 = smul.addr %s149, 4
        %s153 = sadd.s32 %s151, %s152
        %s154 = smul.addr %s153, 4
        %s155 = scalar_lea.vmem %s0, %s154
        %s156 = smul.u32 4, %s17
      $region28: #{conv_bn_relu_layer.3} parent=23 // pred_fallthru
        _
    $region24: #{conv_bn_relu_layer.3} parent=5 // pred_fallthru
      _
    %p157 = scmp.le.s32.totalorder 1, %s9
    %p158 = scmp.lt.s32.totalorder %s9, 3
    %p159 = pnand %p157, %p158
    %p160 = pneg %p159
    // Predicated region
    $region29: #{conv_bn_relu_layer.3} parent=5 // pred_check
      _
    $region30: #{conv_bn_relu_layer.3} parent=5 // pred_check_branch
      %162 = sbr.rel (%p159) target = $region32
    $region31: #{conv_bn_relu_layer.3} parent=5 // pred_region
      %s163 = ssub.s32 %s9, 1
      %s164 = smul.u32 4, %s19
      %p165 = scmp.lt.s32.totalorder %s18, 1
      %s166 = scalar_select %p165, %s18, 1
      %p167 = scmp.lt.s32.totalorder %s164, 3
      %s168 = scalar_select %p167, %s164, 3
      %s169 = smul.addr %s166, 4
      %s170 = sadd.s32 %s168, %s169
      %s171 = smul.addr %s170, 4
      %s172 = scalar_lea.vmem %s0, %s171
      %p173 = pneg %p49
      %p174 = pneg %p46
      %p175 = pneg %p70
      %p176 = pneg %p67
      %p177 = pneg %p91
      %p178 = pneg %p88
      %p179 = pneg %p119
      %p180 = pneg %p116
      %s181 = smul.u32 4, %s19
      %p182 = scmp.lt.s32.totalorder %s18, 1
      %s183 = scalar_select %p182, %s18, 1
      %p184 = scmp.lt.s32.totalorder %s181, 3
      %s185 = scalar_select %p184, %s181, 3
      %s186 = smul.addr %s183, 4
      %s187 = sadd.s32 %s185, %s186
      %s188 = smul.addr %s187, 4
      %s189 = scalar_lea.vmem %s3, %s188
      %s190 = smul.u32 4, %s19
      %p191 = scmp.lt.s32.totalorder %s18, 1
      %s192 = scalar_select %p191, %s18, 1
      %p193 = scmp.lt.s32.totalorder %s190, 3
      %s194 = scalar_select %p193, %s190, 3
      %s195 = smul.addr %s192, 4
      %s196 = sadd.s32 %s194, %s195
      %s197 = smul.addr %s196, 4
      %s198 = scalar_lea.vmem %s0, %s197
      %s199 = smul.u32 4, %s19
      %s200 = smul.u32 4, %s19
      %p201 = scmp.lt.s32.totalorder %s18, 1
      %s202 = scalar_select %p201, %s18, 1
      %p203 = scmp.lt.s32.totalorder %s200, 3
      %s204 = scalar_select %p203, %s200, 3
      %s205 = smul.addr %s202, 4
      %s206 = sadd.s32 %s204, %s205
      %s207 = smul.addr %s206, 4
      %s208 = scalar_lea.vmem %s3, %s207
      %s209 = smul.u32 4, %s19
      %v210 = vld [vmem:[%s198] sm:$0xff]
      %v211 = vld [vmem:[%s198 + $0x8] sm:$0xff]
      %v212 = vunpack.c.l.bf16 %v210
      %v213 = vunpack.c.h.bf16 %v210
      %v214 = vunpack.c.l.bf16 %v211
      %v215 = vunpack.c.h.bf16 %v211
      %v216 = vld [vmem:[%s1] sm:$0xff]
      %218 = vset.pattern.permute.xlu0 0
      %219 = vperm.xlu0 %218, %v216
      %v220 = vpop.permute.xlu0 %219
      %v222 = vmul.f32 %v212, %v220
      %v223 = vmul.f32 %v213, %v220
      %v224 = vmul.f32 %v214, %v220
      %v225 = vmul.f32 %v215, %v220
      %v226 = vld [vmem:[%s2] sm:$0xff]
      %228 = vset.pattern.permute.xlu0 0
      %229 = vperm.xlu0 %228, %v226
      %v230 = vpop.permute.xlu0 %229
      %v232 = vadd.f32 %v222, %v230
      %v233 = vadd.f32 %v223, %v230
      %v234 = vadd.f32 %v224, %v230
      %v235 = vadd.f32 %v225, %v230
      %v236 = vmax.f32 %v232, 0.0
      %v237 = vmax.f32 %v233, 0.0
      %v238 = vmax.f32 %v234, 0.0
      %v239 = vmax.f32 %v235, 0.0
      %v240 = vpack.c.bf16 %v236, %v236
      %v241 = vpack.c.bf16 %v237, %v237
      %v242 = vpack.c.bf16 %v238, %v238
      %v243 = vpack.c.bf16 %v239, %v239
      %v248 = vunpack.c.l.b16 %v240
      %v249 = vunpack.c.l.b16 %v241
      %v250 = vunpack.c.l.b16 %v242
      %v251 = vunpack.c.l.b16 %v243
      %v252 = vpack.c.b16 %v249, %v248
      %v253 = vpack.c.b16 %v251, %v250
      %256 = vst [vmem:[%s208] sm:$0xff] %v252
      %257 = vst [vmem:[%s208 + $0x8] sm:$0xff] %v253
      %s258 = smul.u32 4, %s19
      %p259 = scmp.lt.s32.totalorder %s18, 1
      %s260 = scalar_select %p259, %s18, 1
      %p261 = scmp.lt.s32.totalorder %s258, 3
      %s262 = scalar_select %p261, %s258, 3
      %s263 = smul.addr %s260, 4
      %s264 = sadd.s32 %s262, %s263
      %s265 = smul.addr %s264, 4
      %s266 = scalar_lea.vmem %s3, %s265
      // Predicated region
      $region33: #{conv_bn_relu_layer.3} parent=31 // pred_check
        %p267 = pneg %p116
      $region34: #{conv_bn_relu_layer.3} parent=31 // pred_check_branch
        %269 = sbr.rel (%p267) target = $region36
      $region35: #{conv_bn_relu_layer.3} parent=31 // pred_region
        %s270 = smul.u32 4, %s19
      $region36: #{conv_bn_relu_layer.3} parent=31 // pred_fallthru
        _
    $region32: #{conv_bn_relu_layer.3} parent=5 // pred_fallthru
      _
    %p271 = scmp.le.s32.totalorder 2, %s9
    // Predicated region
    $region37: #{conv_bn_relu_layer.3} parent=5 // pred_check
      %p272 = pneg %p271
    $region38: #{conv_bn_relu_layer.3} parent=5 // pred_check_branch
      %274 = sbr.rel (%p272) target = $region40
    $region39: #{conv_bn_relu_layer.3} parent=5 // pred_region
      %s275 = ssub.s32 %s9, 2
      // Predicated region
      $region41: #{conv_bn_relu_layer.3} parent=39 // pred_check
        %p276 = pneg %p122
      $region42: #{conv_bn_relu_layer.3} parent=39 // pred_check_branch
        %278 = sbr.rel (%p276) target = $region44
      $region43: #{conv_bn_relu_layer.3} parent=39 // pred_region
        %s279 = smul.u32 4, %s21
        %p280 = scmp.lt.s32.totalorder %s20, 1
        %s281 = scalar_select %p280, %s20, 1
        %p282 = scmp.lt.s32.totalorder %s279, 3
        %s283 = scalar_select %p282, %s279, 3
        %s284 = smul.addr %s281, 4
        %s285 = sadd.s32 %s283, %s284
        %s286 = smul.addr %s285, 4
        %s287 = scalar_lea.vmem %s3, %s286
      $region44: #{conv_bn_relu_layer.3} parent=39 // pred_fallthru
        _
    $region40: #{conv_bn_relu_layer.3} parent=5 // pred_fallthru
      _
  $region6: #{conv_bn_relu_layer.3} parent=0 // loop_footer
    %s13 = sadd.s32 1, %s9
  $region7: #{conv_bn_relu_layer.3} parent=0 // loop_footer_branch
    %8 = sbr.rel target = $region3
  $region8: #{conv_bn_relu_layer.3} parent=0 // loop_exit
    _

// kernel: conv_bn_relu_layer.2
$region0: #{conv_bn_relu_layer.2}
  #allocation0 [shape = 'u32[]', space=smem, size = 0x4, offset = 0x4, fixed_abs, tag = 'smem constant byte address 0x4 - core index']
  #allocation1 [shape = 'u32[144,128]{1,0:T(1,128)}', space=vmem, size = 0x12000, scoped, tag = 'internal scratch']
  #allocation2 [shape = 'bf16[72,512]{1,0:T(8,128)(2,1)}', space=vmem, size = 0x12000, scoped, tag = 'scratch operand']
  %s0 = inlined_call_operand.vmem [shape: bf16[2,1,8,640], index: 0, kind: input, shape index: {}]
  %s1 = inlined_call_operand.vmem [shape: bf16[8,72], index: 1, kind: input, shape index: {}]
  %s2 = inlined_call_operand.vmem [shape: f32[1,512], index: 2, kind: input, shape index: {}]
  %s3 = inlined_call_operand.vmem [shape: bf16[2,8,512], index: 3, kind: output, shape index: {0}]
  %s4 = inlined_call_operand.vmem [shape: f32[2,1,8,1], index: 4, kind: output, shape index: {1}]
  %s5 = inlined_call_operand.vmem [shape: f32[2,1,8,1], index: 5, kind: output, shape index: {2}]
  %6 = xla_tuple %s3, %s4, %s5
  %s7 = sld [smem:[#allocation0]]
  $region61: #{conv_bn_relu_layer.2} parent=0
    _
  %s9 = ssub.s32 1, %s7
  %s10 = scalar_select 0, %s9, %s7
  loop: start=0, step=1, limit=4
  $region2: #{conv_bn_relu_layer.2} parent=0 // loop_pre_header
    _
  $region3: #{conv_bn_relu_layer.2} parent=0 // loop_header
    %s12 = sphi 0, %s16
    %p13 = scmp.ge.s32.totalorder %s12, 4
    %s19 = sphi 0, %s31
    %s20 = sphi 0, %s27
    %s21 = sphi 0, %s19
    %s22 = sphi 0, %s20
    %s23 = sphi 0, %s21
    %s24 = sphi 0, %s22
    %s36 = sphi 0, %s38
    %s39 = sphi 0, %s36
    %s40 = sphi 0, %s39
    %s56 = sphi 0, %s40
    %s60 = sphi 0, %s60
    %s62 = sphi 0, %s60
    %s63 = sphi 0, %s62
    %s77 = sphi 0, %s63
    %s83 = sphi 0, %s85
    %s86 = sphi 0, %s83
    %s87 = sphi 0, %s86
    %s103 = sphi 0, %s87
    %s111 = sphi 0, %s113
    %s114 = sphi 0, %s111
    %s115 = sphi 0, %s114
    %s131 = sphi 0, %s115
    %s139 = sphi 0, %s141
    %s142 = sphi 0, %s139
    %s143 = sphi 0, %s142
    %s159 = sphi 0, %s143
    %s167 = sphi 0, %s169
    %s170 = sphi 0, %s167
    %s171 = sphi 0, %s170
    %s187 = sphi 0, %s171
  $region4: #{conv_bn_relu_layer.2} parent=0 // loop_header_branch
    %15 = sbr.rel (%p13) target = $region8
  $region5: #{conv_bn_relu_layer.2} parent=0 // loop_body
    %s17 = ssub.s32 %s12, 1
    %s18 = ssub.s32 %s12, 2
    %s25 = sadd.s32 1, %s20
    %p26 = scmp.ge.s32.totalorder %s25, 1
    %s27 = scalar_select %p26, 0, %s25
    %s28 = sadd.s32 1, %s19
    %s29 = scalar_select %p26, %s28, %s19
    %p30 = scmp.ge.s32.totalorder %s29, 2
    %s31 = scalar_select %p30, 0, %s29
    %s32 = ssub.s32 %s19, %s31
    %s33 = ssub.s32 %s20, %s27
    %s34 = sor.u32 %s32, %s33
    %p35 = scmp.eq.s32.totalorder %s34, 0
    %s37 = sadd.s32 %s36, 1
    %s38 = scalar_select %p35, %s36, %s37
    %p41 = pneg %p35
    %p42 = scmp.eq.s32.totalorder %s12, 1
    %p43 = por %p41, %p42
    %p44 = scmp.ne.s32.totalorder %s36, %s39
    %p45 = scmp.eq.s32.totalorder %s12, 0
    %p46 = por %p44, %p45
    %p47 = scmp.ne.s32.totalorder %s36, %s39
    %p48 = scmp.eq.s32.totalorder %s17, 1
    %p49 = por %p47, %p48
    %p50 = scmp.ne.s32.totalorder %s39, %s40
    %p51 = scmp.eq.s32.totalorder %s17, 0
    %p52 = por %p50, %p51
    %p53 = scmp.ne.s32.totalorder %s39, %s40
    %p54 = scmp.eq.s32.totalorder %s18, 1
    %p55 = por %p53, %p54
    %p57 = scmp.ne.s32.totalorder %s40, %s56
    %p58 = scmp.eq.s32.totalorder %s18, 0
    %p59 = por %p57, %p58
    %s61 = sadd.s32 %s60, 1
    %p64 = scmp.eq.s32.totalorder %s12, 1
    %p65 = scmp.ne.s32.totalorder %s60, %s62
    %p66 = scmp.eq.s32.totalorder %s12, 0
    %p67 = por %p65, %p66
    %p68 = scmp.ne.s32.totalorder %s60, %s62
    %p69 = scmp.eq.s32.totalorder %s17, 1
    %p70 = por %p68, %p69
    %p71 = scmp.ne.s32.totalorder %s62, %s63
    %p72 = scmp.eq.s32.totalorder %s17, 0
    %p73 = por %p71, %p72
    %p74 = scmp.ne.s32.totalorder %s62, %s63
    %p75 = scmp.eq.s32.totalorder %s18, 1
    %p76 = por %p74, %p75
    %p78 = scmp.ne.s32.totalorder %s63, %s77
    %p79 = scmp.eq.s32.totalorder %s18, 0
    %p80 = por %p78, %p79
    %s81 = ssub.s32 %s20, %s27
    %p82 = scmp.eq.s32.totalorder %s81, 0
    %s84 = sadd.s32 %s83, 1
    %s85 = scalar_select %p82, %s83, %s84
    %p88 = pneg %p82
    %p89 = scmp.eq.s32.totalorder %s12, 1
    %p90 = por %p88, %p89
    %p91 = scmp.ne.s32.totalorder %s83, %s86
    %p92 = scmp.eq.s32.totalorder %s12, 0
    %p93 = por %p91, %p92
    %p94 = scmp.ne.s32.totalorder %s83, %s86
    %p95 = scmp.eq.s32.totalorder %s17, 1
    %p96 = por %p94, %p95
    %p97 = scmp.ne.s32.totalorder %s86, %s87
    %p98 = scmp.eq.s32.totalorder %s17, 0
    %p99 = por %p97, %p98
    %p100 = scmp.ne.s32.totalorder %s86, %s87
    %p101 = scmp.eq.s32.totalorder %s18, 1
    %p102 = por %p100, %p101
    %p104 = scmp.ne.s32.totalorder %s87, %s103
    %p105 = scmp.eq.s32.totalorder %s18, 0
    %p106 = por %p104, %p105
    %s107 = ssub.s32 %s19, %s31
    %s108 = ssub.s32 %s20, %s27
    %s109 = sor.u32 %s107, %s108
    %p110 = scmp.eq.s32.totalorder %s109, 0
    %s112 = sadd.s32 %s111, 1
    %s113 = scalar_select %p110, %s111, %s112
    %p116 = pneg %p110
    %p117 = scmp.eq.s32.totalorder %s12, 1
    %p118 = por %p116, %p117
    %p119 = scmp.ne.s32.totalorder %s111, %s114
    %p120 = scmp.eq.s32.totalorder %s12, 0
    %p121 = por %p119, %p120
    %p122 = scmp.ne.s32.totalorder %s111, %s114
    %p123 = scmp.eq.s32.totalorder %s17, 1
    %p124 = por %p122, %p123
    %p125 = scmp.ne.s32.totalorder %s114, %s115
    %p126 = scmp.eq.s32.totalorder %s17, 0
    %p127 = por %p125, %p126
    %p128 = scmp.ne.s32.totalorder %s114, %s115
    %p129 = scmp.eq.s32.totalorder %s18, 1
    %p130 = por %p128, %p129
    %p132 = scmp.ne.s32.totalorder %s115, %s131
    %p133 = scmp.eq.s32.totalorder %s18, 0
    %p134 = por %p132, %p133
    %s135 = ssub.s32 %s19, %s31
    %s136 = ssub.s32 %s20, %s27
    %s137 = sor.u32 %s135, %s136
    %p138 = scmp.eq.s32.totalorder %s137, 0
    %s140 = sadd.s32 %s139, 1
    %s141 = scalar_select %p138, %s139, %s140
    %p144 = pneg %p138
    %p145 = scmp.eq.s32.totalorder %s12, 1
    %p146 = por %p144, %p145
    %p147 = scmp.ne.s32.totalorder %s139, %s142
    %p148 = scmp.eq.s32.totalorder %s12, 0
    %p149 = por %p147, %p148
    %p150 = scmp.ne.s32.totalorder %s139, %s142
    %p151 = scmp.eq.s32.totalorder %s17, 1
    %p152 = por %p150, %p151
    %p153 = scmp.ne.s32.totalorder %s142, %s143
    %p154 = scmp.eq.s32.totalorder %s17, 0
    %p155 = por %p153, %p154
    %p156 = scmp.ne.s32.totalorder %s142, %s143
    %p157 = scmp.eq.s32.totalorder %s18, 1
    %p158 = por %p156, %p157
    %p160 = scmp.ne.s32.totalorder %s143, %s159
    %p161 = scmp.eq.s32.totalorder %s18, 0
    %p162 = por %p160, %p161
    %s163 = ssub.s32 %s19, %s31
    %s164 = ssub.s32 %s20, %s27
    %s165 = sor.u32 %s163, %s164
    %p166 = scmp.eq.s32.totalorder %s165, 0
    %s168 = sadd.s32 %s167, 1
    %s169 = scalar_select %p166, %s167, %s168
    %p172 = pneg %p166
    %p173 = scmp.eq.s32.totalorder %s12, 1
    %p174 = por %p172, %p173
    %p175 = scmp.ne.s32.totalorder %s167, %s170
    %p176 = scmp.eq.s32.totalorder %s12, 0
    %p177 = por %p175, %p176
    %p178 = scmp.ne.s32.totalorder %s167, %s170
    %p179 = scmp.eq.s32.totalorder %s17, 1
    %p180 = por %p178, %p179
    %p181 = scmp.ne.s32.totalorder %s170, %s171
    %p182 = scmp.eq.s32.totalorder %s17, 0
    %p183 = por %p181, %p182
    %p184 = scmp.ne.s32.totalorder %s170, %s171
    %p185 = scmp.eq.s32.totalorder %s18, 1
    %p186 = por %p184, %p185
    %p188 = scmp.ne.s32.totalorder %s171, %s187
    %p189 = scmp.eq.s32.totalorder %s18, 0
    %p190 = por %p188, %p189
    %p191 = scmp.le.s32.totalorder 1, %s12
    %p192 = scmp.lt.s32.totalorder %s12, 3
    %p193 = pnand %p191, %p192
    %p194 = pneg %p193
    // Predicated region
    $region9: #{conv_bn_relu_layer.2} parent=5 // pred_check
      _
    $region10: #{conv_bn_relu_layer.2} parent=5 // pred_check_branch
      %196 = sbr.rel (%p193) target = $region12
    $region11: #{conv_bn_relu_layer.2} parent=5 // pred_region
      %s197 = ssub.s32 %s12, 1
      // Predicated region
      $region13: #{conv_bn_relu_layer.2} parent=11 // pred_check
        %p198 = pneg %p73
      $region14: #{conv_bn_relu_layer.2} parent=11 // pred_check_branch
        %200 = sbr.rel (%p198) target = $region16
      $region15: #{conv_bn_relu_layer.2} parent=11 // pred_region
        _
      $region16: #{conv_bn_relu_layer.2} parent=11 // pred_fallthru
        _
      // Predicated region
      $region17: #{conv_bn_relu_layer.2} parent=11 // pred_check
        %p201 = pneg %p99
      $region18: #{conv_bn_relu_layer.2} parent=11 // pred_check_branch
        %203 = sbr.rel (%p201) target = $region20
      $region19: #{conv_bn_relu_layer.2} parent=11 // pred_region
        %s204 = smul.u32 4, %s22
        %p205 = scmp.lt.s32.totalorder %s204, 3
        %s206 = scalar_select %p205, %s204, 3
        %s207 = scalar_lea.vmem %s2, %s206
        %s208 = smul.u32 4, %s22
      $region20: #{conv_bn_relu_layer.2} parent=11 // pred_fallthru
        _
    $region12: #{conv_bn_relu_layer.2} parent=5 // pred_fallthru
      _
    %p209 = scmp.lt.s32.totalorder %s12, 2
    // Predicated region
    $region21: #{conv_bn_relu_layer.2} parent=5 // pred_check
      %p210 = pneg %p209
    $region22: #{conv_bn_relu_layer.2} parent=5 // pred_check_branch
      %212 = sbr.rel (%p210) target = $region24
    $region23: #{conv_bn_relu_layer.2} parent=5 // pred_region
      // Predicated region
      $region25: #{conv_bn_relu_layer.2} parent=23 // pred_check
        %p213 = pneg %p46
      $region26: #{conv_bn_relu_layer.2} parent=23 // pred_check_branch
        %215 = sbr.rel (%p213) target = $region28
      $region27: #{conv_bn_relu_layer.2} parent=23 // pred_region
        %p216 = scmp.lt.s32.totalorder %s19, 1
        %s217 = scalar_select %p216, %s19, 1
        %p218 = scmp.lt.s32.totalorder %s20, 0
        %s219 = scalar_select %p218, %s20, 0
        %s220 = smul.addr %s219, 5
        %s221 = smul.addr %s217, 5
        %s222 = sadd.s32 %s220, %s221
        %s223 = smul.addr %s222, 4
        %s224 = scalar_lea.vmem %s0, %s223
      $region28: #{conv_bn_relu_layer.2} parent=23 // pred_fallthru
        _
    $region24: #{conv_bn_relu_layer.2} parent=5 // pred_fallthru
      _
    %p225 = scmp.le.s32.totalorder 1, %s12
    %p226 = scmp.lt.s32.totalorder %s12, 3
    %p227 = pnand %p225, %p226
    %p228 = pneg %p227
    // Predicated region
    $region29: #{conv_bn_relu_layer.2} parent=5 // pred_check
      _
    $region30: #{conv_bn_relu_layer.2} parent=5 // pred_check_branch
      %230 = sbr.rel (%p227) target = $region32
    $region31: #{conv_bn_relu_layer.2} parent=5 // pred_region
      %s231 = ssub.s32 %s12, 1
      %p232 = scmp.lt.s32.totalorder %s21, 1
      %s233 = scalar_select %p232, %s21, 1
      %p234 = scmp.lt.s32.totalorder %s22, 0
      %s235 = scalar_select %p234, %s22, 0
      %s236 = smul.addr %s235, 5
      %s237 = smul.addr %s233, 5
      %s238 = sadd.s32 %s236, %s237
      %s239 = smul.addr %s238, 4
      %s240 = scalar_lea.vmem %s0, %s239
      %p241 = pneg %p52
      %p242 = pneg %p49
      %p243 = pneg %p73
      %p244 = pneg %p70
      %s245 = smul.u32 4, %s22
      %p246 = scmp.lt.s32.totalorder %s245, 3
      %s247 = scalar_select %p246, %s245, 3
      %s248 = scalar_lea.vmem %s2, %s247
      %p249 = pneg %p99
      %p250 = pneg %p96
      %p251 = pneg %p127
      %p252 = pneg %p124
      %s253 = smul.u32 4, %s22
      %p254 = scmp.lt.s32.totalorder %s21, 1
      %s255 = scalar_select %p254, %s21, 1
      %p256 = scmp.lt.s32.totalorder %s253, 3
      %s257 = scalar_select %p256, %s253, 3
      %s258 = smul.addr %s255, 4
      %s259 = sadd.s32 %s257, %s258
      %s260 = smul.addr %s259, 4
      %s261 = scalar_lea.vmem %s3, %s260
      %p262 = pneg %p155
      %p263 = pneg %p152
      %p264 = scmp.lt.s32.totalorder %s21, 1
      %s265 = scalar_select %p264, %s21, 1
      %p266 = scmp.lt.s32.totalorder %s22, 0
      %s267 = scalar_select %p266, %s22, 0
      %s268 = sadd.s32 %s267, %s265
      %s269 = smul.addr %s268, 8
      %s270 = scalar_lea.vmem %s4, %s269
      %p271 = pneg %p183
      %p272 = pneg %p180
      %p273 = scmp.lt.s32.totalorder %s21, 1
      %s274 = scalar_select %p273, %s21, 1
      %p275 = scmp.lt.s32.totalorder %s22, 0
      %s276 = scalar_select %p275, %s22, 0
      %s277 = sadd.s32 %s276, %s274
      %s278 = smul.addr %s277, 8
      %s279 = scalar_lea.vmem %s5, %s278
      %p280 = scmp.lt.s32.totalorder %s21, 1
      %s281 = scalar_select %p280, %s21, 1
      %p282 = scmp.lt.s32.totalorder %s22, 0
      %s283 = scalar_select %p282, %s22, 0
      %s284 = smul.addr %s283, 5
      %s285 = smul.addr %s281, 5
      %s286 = sadd.s32 %s284, %s285
      %s287 = smul.addr %s286, 4
      %s288 = scalar_lea.vmem %s0, %s287
      %s289 = smul.u32 4, %s22
      %p290 = scmp.lt.s32.totalorder %s289, 3
      %s291 = scalar_select %p290, %s289, 3
      %s292 = scalar_lea.vmem %s2, %s291
      %s293 = smul.u32 4, %s22
      %s294 = smul.u32 4, %s22
      %p295 = scmp.lt.s32.totalorder %s21, 1
      %s296 = scalar_select %p295, %s21, 1
      %p297 = scmp.lt.s32.totalorder %s294, 3
      %s298 = scalar_select %p297, %s294, 3
      %s299 = smul.addr %s296, 4
      %s300 = sadd.s32 %s298, %s299
      %s301 = smul.addr %s300, 4
      %s302 = scalar_lea.vmem %s3, %s301
      %s303 = smul.u32 4, %s22
      %p304 = scmp.lt.s32.totalorder %s21, 1
      %s305 = scalar_select %p304, %s21, 1
      %p306 = scmp.lt.s32.totalorder %s22, 0
      %s307 = scalar_select %p306, %s22, 0
      %s308 = sadd.s32 %s307, %s305
      %s309 = smul.addr %s308, 8
      %s310 = scalar_lea.vmem %s4, %s309
      %p311 = scmp.lt.s32.totalorder %s21, 1
      %s312 = scalar_select %p311, %s21, 1
      %p313 = scmp.lt.s32.totalorder %s22, 0
      %s314 = scalar_select %p313, %s22, 0
      %s315 = sadd.s32 %s314, %s312
      %s316 = smul.addr %s315, 8
      %s317 = scalar_lea.vmem %s5, %s316
      %v319 = vld [vmem:[%s288] sm:$0xff]
      %v320 = vld [vmem:[%s288 + $0x8] sm:$0xff]
      %321 = vst [vmem:[#allocation2] sm:$0xff] %v319
      %322 = vst [vmem:[#allocation2 + $0x8] sm:$0xff] %v320
      %v323 = vld [vmem:[%s288] sm:$0xff]
      %v324 = vld [vmem:[%s288 + $0x8] sm:$0xff]
      %v325 = vld [vmem:[%s288 + $0x10] sm:$0xf]
      %329 = vrot.lane.b32.xlu0 %v323, 127
      %v330 = vpop.permute.xlu0 %329
      %331 = vrot.lane.b32.xlu0 %v324, 127
      %v332 = vpop.permute.xlu0 %331
      %333 = vrot.lane.b32.xlu0 %v325, 127
      %v334 = vpop.permute.xlu0 %333
      %v335 = vrot.slane %v330, 4
      %v336 = vrot.slane %v332, 4
      %v337 = vrot.slane %v334, 4
      %vm338 = vcmask 1043456
      %v339 = vsel %vm338, %v335, %v336
      %vm340 = vcmask 1039360
      %v341 = vsel %vm340, %v330, %v339
      %v342 = vsel %vm338, %v336, %v337
      %v343 = vsel %vm340, %v332, %v342
      %346 = vst [vmem:[#allocation2 + $0x10] sm:$0xff] %v341
      %347 = vst [vmem:[#allocation2 + $0x18] sm:$0xff] %v343
      %v348 = vld [vmem:[%s288] sm:$0xff]
      %v349 = vld [vmem:[%s288 + $0x8] sm:$0xff]
      %v350 = vld [vmem:[%s288 + $0x10] sm:$0xf]
      %354 = vrot.lane.b32.xlu0 %v348, 126
      %v355 = vpop.permute.xlu0 %354
      %356 = vrot.lane.b32.xlu0 %v349, 126
      %v357 = vpop.permute.xlu0 %356
      %358 = vrot.lane.b32.xlu0 %v350, 126
      %v359 = vpop.permute.xlu0 %358
      %v360 = vrot.slane %v355, 4
      %v361 = vrot.slane %v357, 4
      %v362 = vrot.slane %v359, 4
      %v363 = vsel %vm338, %v360, %v361
      %vm364 = vcmask 1031168
      %v365 = vsel %vm364, %v355, %v363
      %v366 = vsel %vm338, %v361, %v362
      %v367 = vsel %vm364, %v357, %v366
      %370 = vst [vmem:[#allocation2 + $0x20] sm:$0xff] %v365
      %371 = vst [vmem:[#allocation2 + $0x28] sm:$0xff] %v367
      %v372 = vld [vmem:[%s288] sm:$0xff]
      %v373 = vld [vmem:[%s288 + $0x8] sm:$0xff]
      %v374 = vld [vmem:[%s288 + $0x10] sm:$0xf]
      %378 = vrot.lane.b32.xlu0 %v372, 110
      %v379 = vpop.permute.xlu0 %378
      %380 = vrot.lane.b32.xlu0 %v373, 110
      %v381 = vpop.permute.xlu0 %380
      %382 = vrot.lane.b32.xlu0 %v374, 110
      %v383 = vpop.permute.xlu0 %382
      %v384 = vrot.slane %v379, 4
      %v385 = vrot.slane %v381, 4
      %v386 = vrot.slane %v383, 4
      %v387 = vsel %vm338, %v384, %v385
      %vm388 = vcmask 900096
      %v389 = vsel %vm388, %v379, %v387
      %v390 = vsel %vm338, %v385, %v386
      %v391 = vsel %vm388, %v381, %v390
      %394 = vst [vmem:[#allocation2 + $0x30] sm:$0xff] %v389
      %395 = vst [vmem:[#allocation2 + $0x38] sm:$0xff] %v391
      %v396 = vld [vmem:[%s288] sm:$0xff]
      %v397 = vld [vmem:[%s288 + $0x8] sm:$0xff]
      %v398 = vld [vmem:[%s288 + $0x10] sm:$0xf]
      %402 = vrot.lane.b32.xlu0 %v396, 109
      %v403 = vpop.permute.xlu0 %402
      %404 = vrot.lane.b32.xlu0 %v397, 109
      %v405 = vpop.permute.xlu0 %404
      %406 = vrot.lane.b32.xlu0 %v398, 109
      %v407 = vpop.permute.xlu0 %406
      %v408 = vrot.slane %v403, 4
      %v409 = vrot.slane %v405, 4
      %v410 = vrot.slane %v407, 4
      %v411 = vsel %vm338, %v408, %v409
      %vm412 = vcmask 891904
      %v413 = vsel %vm412, %v403, %v411
      %v414 = vsel %vm338, %v409, %v410
      %v415 = vsel %vm412, %v405, %v414
      %418 = vst [vmem:[#allocation2 + $0x40] sm:$0xff] %v413
      %419 = vst [vmem:[#allocation2 + $0x48] sm:$0xff] %v415
      %v420 = vld [vmem:[%s288] sm:$0xff]
      %v421 = vld [vmem:[%s288 + $0x8] sm:$0xff]
      %v422 = vld [vmem:[%s288 + $0x10] sm:$0xf]
      %426 = vrot.lane.b32.xlu0 %v420, 108
      %v427 = vpop.permute.xlu0 %426
      %428 = vrot.lane.b32.xlu0 %v421, 108
      %v429 = vpop.permute.xlu0 %428
      %430 = vrot.lane.b32.xlu0 %v422, 108
      %v431 = vpop.permute.xlu0 %430
      %v432 = vrot.slane %v427, 4
      %v433 = vrot.slane %v429, 4
      %v434 = vrot.slane %v431, 4
      %v435 = vsel %vm338, %v432, %v433
      %vm436 = vcmask 883712
      %v437 = vsel %vm436, %v427, %v435
      %v438 = vsel %vm338, %v433, %v434
      %v439 = vsel %vm436, %v429, %v438
      %442 = vst [vmem:[#allocation2 + $0x50] sm:$0xff] %v437
      %443 = vst [vmem:[#allocation2 + $0x58] sm:$0xff] %v439
      %v444 = vld [vmem:[%s288] sm:$0xff]
      %v445 = vld [vmem:[%s288 + $0x8] sm:$0xff]
      %v446 = vld [vmem:[%s288 + $0x10] sm:$0xf]
      %450 = vrot.lane.b32.xlu0 %v444, 92
      %v451 = vpop.permute.xlu0 %450
      %452 = vrot.lane.b32.xlu0 %v445, 92
      %v453 = vpop.permute.xlu0 %452
      %454 = vrot.lane.b32.xlu0 %v446, 92
      %v455 = vpop.permute.xlu0 %454
      %v456 = vrot.slane %v451, 4
      %v457 = vrot.slane %v453, 4
      %v458 = vrot.slane %v455, 4
      %v459 = vsel %vm338, %v456, %v457
      %vm460 = vcmask 752640
      %v461 = vsel %vm460, %v451, %v459
      %v462 = vsel %vm338, %v457, %v458
      %v463 = vsel %vm460, %v453, %v462
      %466 = vst [vmem:[#allocation2 + $0x60] sm:$0xff] %v461
      %467 = vst [vmem:[#allocation2 + $0x68] sm:$0xff] %v463
      %v468 = vld [vmem:[%s288] sm:$0xff]
      %v469 = vld [vmem:[%s288 + $0x8] sm:$0xff]
      %v470 = vld [vmem:[%s288 + $0x10] sm:$0xf]
      %474 = vrot.lane.b32.xlu0 %v468, 91
      %v475 = vpop.permute.xlu0 %474
      %476 = vrot.lane.b32.xlu0 %v469, 91
      %v477 = vpop.permute.xlu0 %476
      %478 = vrot.lane.b32.xlu0 %v470, 91
      %v479 = vpop.permute.xlu0 %478
      %v480 = vrot.slane %v475, 4
      %v481 = vrot.slane %v477, 4
      %v482 = vrot.slane %v479, 4
      %v483 = vsel %vm338, %v480, %v481
      %vm484 = vcmask 744448
      %v485 = vsel %vm484, %v475, %v483
      %v486 = vsel %vm338, %v481, %v482
      %v487 = vsel %vm484, %v477, %v486
      %490 = vst [vmem:[#allocation2 + $0x70] sm:$0xff] %v485
      %491 = vst [vmem:[#allocation2 + $0x78] sm:$0xff] %v487
      %v492 = vld [vmem:[%s288] sm:$0xff]
      %v493 = vld [vmem:[%s288 + $0x8] sm:$0xff]
      %v494 = vld [vmem:[%s288 + $0x10] sm:$0xf]
      %498 = vrot.lane.b32.xlu0 %v492, 90
      %v499 = vpop.permute.xlu0 %498
      %500 = vrot.lane.b32.xlu0 %v493, 90
      %v501 = vpop.permute.xlu0 %500
      %502 = vrot.lane.b32.xlu0 %v494, 90
      %v503 = vpop.permute.xlu0 %502
      %v504 = vrot.slane %v499, 4
      %v505 = vrot.slane %v501, 4
      %v506 = vrot.slane %v503, 4
      %v507 = vsel %vm338, %v504, %v505
      %vm508 = vcmask 736256
      %v509 = vsel %vm508, %v499, %v507
      %v510 = vsel %vm338, %v505, %v506
      %v511 = vsel %vm508, %v501, %v510
      %514 = vst [vmem:[#allocation2 + $0x80] sm:$0xff] %v509
      %515 = vst [vmem:[#allocation2 + $0x88] sm:$0xff] %v511
      %v516 = vld [vmem:[%s1] sm:$0xf]
      %v517 = vld [vmem:[#allocation2] sm:$0xff]
      %v518 = vld [vmem:[#allocation2 + $0x8] sm:$0xff]
      %v519 = vld [vmem:[#allocation2 + $0x10] sm:$0xff]
      %v520 = vld [vmem:[#allocation2 + $0x18] sm:$0xff]
      %v521 = vld [vmem:[#allocation2 + $0x20] sm:$0xff]
      %v522 = vld [vmem:[#allocation2 + $0x28] sm:$0xff]
      %v523 = vld [vmem:[#allocation2 + $0x30] sm:$0xff]
      %v524 = vld [vmem:[#allocation2 + $0x38] sm:$0xff]
      %v525 = vld [vmem:[#allocation2 + $0x40] sm:$0xff]
      %v526 = vld [vmem:[#allocation2 + $0x48] sm:$0xff]
      %v527 = vld [vmem:[#allocation2 + $0x50] sm:$0xff]
      %v528 = vld [vmem:[#allocation2 + $0x58] sm:$0xff]
      %v529 = vld [vmem:[#allocation2 + $0x60] sm:$0xff]
      %v530 = vld [vmem:[#allocation2 + $0x68] sm:$0xff]
      %v531 = vld [vmem:[#allocation2 + $0x70] sm:$0xff]
      %v532 = vld [vmem:[#allocation2 + $0x78] sm:$0xff]
      %v533 = vld [vmem:[#allocation2 + $0x80] sm:$0xff]
      %v534 = vld [vmem:[#allocation2 + $0x88] sm:$0xff]
      %v553 = vunpack.c.l.b16 %v517
      %v554 = vunpack.c.h.b16 %v517
      %v555 = vunpack.c.l.b16 %v518
      %v556 = vunpack.c.h.b16 %v518
      %v557 = vunpack.c.l.b16 %v519
      %v558 = vunpack.c.h.b16 %v519
      %v559 = vunpack.c.l.b16 %v520
      %v560 = vunpack.c.h.b16 %v520
      %v561 = vunpack.c.l.b16 %v521
      %v562 = vunpack.c.h.b16 %v521
      %v563 = vunpack.c.l.b16 %v522
      %v564 = vunpack.c.h.b16 %v522
      %v565 = vunpack.c.l.b16 %v523
      %v566 = vunpack.c.h.b16 %v523
      %v567 = vunpack.c.l.b16 %v524
      %v568 = vunpack.c.h.b16 %v524
      %v569 = vunpack.c.l.b16 %v525
      %v570 = vunpack.c.h.b16 %v525
      %v571 = vunpack.c.l.b16 %v526
      %v572 = vunpack.c.h.b16 %v526
      %v573 = vunpack.c.l.b16 %v527
      %v574 = vunpack.c.h.b16 %v527
      %v575 = vunpack.c.l.b16 %v528
      %v576 = vunpack.c.h.b16 %v528
      %v577 = vunpack.c.l.b16 %v529
      %v578 = vunpack.c.h.b16 %v529
      %v579 = vunpack.c.l.b16 %v530
      %v580 = vunpack.c.h.b16 %v530
      %v581 = vunpack.c.l.b16 %v531
      %v582 = vunpack.c.h.b16 %v531
      %v583 = vunpack.c.l.b16 %v532
      %v584 = vunpack.c.h.b16 %v532
      %v585 = vunpack.c.l.b16 %v533
      %v586 = vunpack.c.h.b16 %v533
      %v587 = vunpack.c.l.b16 %v534
      %v588 = vunpack.c.h.b16 %v534
      %v589 = vpack.c.b16 %v557, %v553
      %v590 = vpack.c.b16 %v558, %v554
      %v591 = vpack.c.b16 %v559, %v555
      %v592 = vpack.c.b16 %v560, %v556
      %v593 = vpack.c.b16 %v565, %v561
      %v594 = vpack.c.b16 %v566, %v562
      %v595 = vpack.c.b16 %v567, %v563
      %v596 = vpack.c.b16 %v568, %v564
      %v597 = vpack.c.b16 %v573, %v569
      %v598 = vpack.c.b16 %v574, %v570
      %v599 = vpack.c.b16 %v575, %v571
      %v600 = vpack.c.b16 %v576, %v572
      %v601 = vpack.c.b16 %v581, %v577
      %v602 = vpack.c.b16 %v582, %v578
      %v603 = vpack.c.b16 %v583, %v579
      %v604 = vpack.c.b16 %v584, %v580
      %v605 = vpack.c.b16 %v585, %v585
      %v606 = vpack.c.b16 %v586, %v586
      %v607 = vpack.c.b16 %v587, %v587
      %v608 = vpack.c.b16 %v588, %v588
      %vm625 = vcmask 588800
      %v627 = vsel %vm625, %v516, 0
      %vm629 = vcmask 1043456
      %v631 = vsel %vm629, %v605, 0
      %v634 = vsel %vm629, %v606, 0
      %v637 = vsel %vm629, %v607, 0
      %v640 = vsel %vm629, %v608, 0
      %642 = vmatprep.subr.bf16.mxu0 %v590
      %643 = vmatpush1.bf16.msra.mxu0 %v589
      %644 = vmatprep.subr.bf16.mxu0 %v594
      %645 = vmatpush1.bf16.msra.mxu0 %v593
      %646 = vmatprep.subr.bf16.mxu0 %v598
      %647 = vmatpush1.bf16.msra.mxu0 %v597
      %648 = vmatprep.subr.bf16.mxu0 %v602
      %649 = vmatpush1.bf16.msra.mxu0 %v601
      %650 = vmatprep.subr.bf16.mxu0 %v634
      %651 = vmatpush1.bf16.msra.mxu0 %v631
      %652 = vmatprep.subr.bf16.mxu0 0
      %653 = vmatpush1.bf16.msra.mxu0 0
      %654 = vmatprep.subr.bf16.mxu0 0
      %655 = vmatpush1.bf16.msra.mxu0 0
      %656 = vmatprep.subr.bf16.mxu0 0
      %657 = vmatpush1.bf16.msra.mxu0 0
      %658 = vmatprep.subr.bf16.mxu0 0
      %659 = vmatpush1.bf16.msra.mxu0 0
      %660 = vmatprep.subr.bf16.mxu0 0
      %661 = vmatpush1.bf16.msra.mxu0 0
      %662 = vmatprep.subr.bf16.mxu0 0
      %663 = vmatpush1.bf16.msra.mxu0 0
      %664 = vmatprep.subr.bf16.mxu0 0
      %665 = vmatpush1.bf16.msra.mxu0 0
      %666 = vmatprep.subr.bf16.mxu0 0
      %667 = vmatpush1.bf16.msra.mxu0 0
      %668 = vmatprep.subr.bf16.mxu0 0
      %669 = vmatpush1.bf16.msra.mxu0 0
      %670 = vmatprep.subr.bf16.mxu0 0
      %671 = vmatpush1.bf16.msra.mxu0 0
      %672 = vmatprep.subr.bf16.mxu0 0
      %673 = vmatpush1.bf16.msra.mxu0 0
      %674 = vmatprep.mubr.bf16.mxu0 0
      %675 = vmatmul.mubr.bf16.gmra.mrb[0].mxu0 %v627
      %v676 = vpop.f32.mrb[0].mxu0
      %v677 = vadd.f32 0.0, %v676
      %v678 = vpop.f32.mrb[0].mxu0
      %v679 = vadd.f32 0.0, %v678
      %v680 = vpop.f32.mrb[0].mxu0
      %v681 = vpop.f32.mrb[0].mxu0
      %682 = vdwg.mxu0
      %683 = vmatprep.subr.bf16.mxu0 %v592
      %684 = vmatpush1.bf16.msra.mxu0 %v591
      %685 = vmatprep.subr.bf16.mxu0 %v596
      %686 = vmatpush1.bf16.msra.mxu0 %v595
      %687 = vmatprep.subr.bf16.mxu0 %v600
      %688 = vmatpush1.bf16.msra.mxu0 %v599
      %689 = vmatprep.subr.bf16.mxu0 %v604
      %690 = vmatpush1.bf16.msra.mxu0 %v603
      %691 = vmatprep.subr.bf16.mxu0 %v640
      %692 = vmatpush1.bf16.msra.mxu0 %v637
      %693 = vmatprep.subr.bf16.mxu0 0
      %694 = vmatpush1.bf16.msra.mxu0 0
      %695 = vmatprep.subr.bf16.mxu0 0
      %696 = vmatpush1.bf16.msra.mxu0 0
      %697 = vmatprep.subr.bf16.mxu0 0
      %698 = vmatpush1.bf16.msra.mxu0 0
      %699 = vmatprep.subr.bf16.mxu0 0
      %700 = vmatpush1.bf16.msra.mxu0 0
      %701 = vmatprep.subr.bf16.mxu0 0
      %702 = vmatpush1.bf16.msra.mxu0 0
      %703 = vmatprep.subr.bf16.mxu0 0
      %704 = vmatpush1.bf16.msra.mxu0 0
      %705 = vmatprep.subr.bf16.mxu0 0
      %706 = vmatpush1.bf16.msra.mxu0 0
      %707 = vmatprep.subr.bf16.mxu0 0
      %708 = vmatpush1.bf16.msra.mxu0 0
      %709 = vmatprep.subr.bf16.mxu0 0
      %710 = vmatpush1.bf16.msra.mxu0 0
      %711 = vmatprep.subr.bf16.mxu0 0
      %712 = vmatpush1.bf16.msra.mxu0 0
      %713 = vmatprep.subr.bf16.mxu0 0
      %714 = vmatpush1.bf16.msra.mxu0 0
      %715 = vmatprep.mubr.bf16.mxu0 0
      %716 = vmatmul.mubr.bf16.gmra.mrb[0].mxu0 %v627
      %v717 = vpop.f32.mrb[0].mxu0
      %v718 = vadd.f32 0.0, %v717
      %v719 = vpop.f32.mrb[0].mxu0
      %v720 = vadd.f32 0.0, %v719
      %v721 = vpop.f32.mrb[0].mxu0
      %v722 = vpop.f32.mrb[0].mxu0
      %723 = vdwg.mxu0
      %v724 = vld [vmem:[%s292] sm:$0xf]
      %v726 = vlaneseq
      %v727 = vshrl.u32 %v726, 7
      %v728 = vsub.s32 0, %v727
      %v729 = vrot.slane %v724, %v728
      %v730 = vlaneseq
      %v731 = vshrl.u32 %v730, 7
      %v732 = vsub.s32 1, %v731
      %v733 = vrot.slane %v724, %v732
      %v734 = vlaneseq
      %v735 = vshrl.u32 %v734, 7
      %v736 = vsub.s32 2, %v735
      %v737 = vrot.slane %v724, %v736
      %v738 = vlaneseq
      %v739 = vshrl.u32 %v738, 7
      %v740 = vsub.s32 3, %v739
      %v741 = vrot.slane %v724, %v740
      %v746 = vmul.f32 %v677, %v729
      %v747 = vmul.f32 %v679, %v733
      %v748 = vmul.f32 %v718, %v737
      %v749 = vmul.f32 %v720, %v741
      %v750 = vpack.c.bf16 %v746, %v746
      %v751 = vpack.c.bf16 %v747, %v747
      %v752 = vpack.c.bf16 %v748, %v748
      %v753 = vpack.c.bf16 %v749, %v749
      %v758 = vunpack.c.l.b16 %v750
      %v759 = vunpack.c.l.b16 %v751
      %v760 = vunpack.c.l.b16 %v752
      %v761 = vunpack.c.l.b16 %v753
      %v762 = vpack.c.b16 %v759, %v758
      %v763 = vpack.c.b16 %v761, %v760
      %766 = vst [vmem:[%s302] sm:$0xff] %v762
      %767 = vst [vmem:[%s302 + $0x8] sm:$0xff] %v763
      %v768 = vadd.f32 %v746, %v747
      %v769 = vadd.f32 %v768, %v748
      %v770 = vadd.f32 %v769, %v749
      %771 = vadd.xlane.f32.xlu0 %v770
      %v772 = vpop.xlane.xlu0 %771
      %vm773 = vcmask 7168
      %774 = vst.msk [vmem:[%s310] sm:$0xff] %vm773, %v772
      %v775 = vmul.f32 %v746, %v746
      %v776 = vmul.f32 %v747, %v747
      %v777 = vmul.f32 %v748, %v748
      %v778 = vmul.f32 %v749, %v749
      %v779 = vadd.f32 %v775, %v776
      %v780 = vadd.f32 %v779, %v777
      %v781 = vadd.f32 %v780, %v778
      %782 = vadd.xlane.f32.xlu0 %v781
      %v783 = vpop.xlane.xlu0 %782
      %784 = vst.msk [vmem:[%s317] sm:$0xff] %vm773, %v783
      %s785 = smul.u32 4, %s22
      %p786 = scmp.lt.s32.totalorder %s21, 1
      %s787 = scalar_select %p786, %s21, 1
      %p788 = scmp.lt.s32.totalorder %s785, 3
      %s789 = scalar_select %p788, %s785, 3
      %s790 = smul.addr %s787, 4
      %s791 = sadd.s32 %s789, %s790
      %s792 = smul.addr %s791, 4
      %s793 = scalar_lea.vmem %s3, %s792
      %p794 = scmp.lt.s32.totalorder %s21, 1
      %s795 = scalar_select %p794, %s21, 1
      %p796 = scmp.lt.s32.totalorder %s22, 0
      %s797 = scalar_select %p796, %s22, 0
      %s798 = sadd.s32 %s797, %s795
      %s799 = smul.addr %s798, 8
      %s800 = scalar_lea.vmem %s4, %s799
      %p801 = scmp.lt.s32.totalorder %s21, 1
      %s802 = scalar_select %p801, %s21, 1
      %p803 = scmp.lt.s32.totalorder %s22, 0
      %s804 = scalar_select %p803, %s22, 0
      %s805 = sadd.s32 %s804, %s802
      %s806 = smul.addr %s805, 8
      %s807 = scalar_lea.vmem %s5, %s806
      // Predicated region
      $region33: #{conv_bn_relu_layer.2} parent=31 // pred_check
        %p808 = pneg %p124
      $region34: #{conv_bn_relu_layer.2} parent=31 // pred_check_branch
        %810 = sbr.rel (%p808) target = $region36
      $region35: #{conv_bn_relu_layer.2} parent=31 // pred_region
        %s811 = smul.u32 4, %s22
      $region36: #{conv_bn_relu_layer.2} parent=31 // pred_fallthru
        _
      // Predicated region
      $region37: #{conv_bn_relu_layer.2} parent=31 // pred_check
        %p812 = pneg %p152
      $region38: #{conv_bn_relu_layer.2} parent=31 // pred_check_branch
        %814 = sbr.rel (%p812) target = $region40
      $region39: #{conv_bn_relu_layer.2} parent=31 // pred_region
        _
      $region40: #{conv_bn_relu_layer.2} parent=31 // pred_fallthru
        _
      // Predicated region
      $region41: #{conv_bn_relu_layer.2} parent=31 // pred_check
        %p815 = pneg %p180
      $region42: #{conv_bn_relu_layer.2} parent=31 // pred_check_branch
        %817 = sbr.rel (%p815) target = $region44
      $region43: #{conv_bn_relu_layer.2} parent=31 // pred_region
        _
      $region44: #{conv_bn_relu_layer.2} parent=31 // pred_fallthru
        _
    $region32: #{conv_bn_relu_layer.2} parent=5 // pred_fallthru
      _
    %p818 = scmp.le.s32.totalorder 2, %s12
    // Predicated region
    $region45: #{conv_bn_relu_layer.2} parent=5 // pred_check
      %p819 = pneg %p818
    $region46: #{conv_bn_relu_layer.2} parent=5 // pred_check_branch
      %821 = sbr.rel (%p819) target = $region48
    $region47: #{conv_bn_relu_layer.2} parent=5 // pred_region
      %s822 = ssub.s32 %s12, 2
      // Predicated region
      $region49: #{conv_bn_relu_layer.2} parent=47 // pred_check
        %p823 = pneg %p130
      $region50: #{conv_bn_relu_layer.2} parent=47 // pred_check_branch
        %825 = sbr.rel (%p823) target = $region52
      $region51: #{conv_bn_relu_layer.2} parent=47 // pred_region
        %s826 = smul.u32 4, %s24
        %p827 = scmp.lt.s32.totalorder %s23, 1
        %s828 = scalar_select %p827, %s23, 1
        %p829 = scmp.lt.s32.totalorder %s826, 3
        %s830 = scalar_select %p829, %s826, 3
        %s831 = smul.addr %s828, 4
        %s832 = sadd.s32 %s830, %s831
        %s833 = smul.addr %s832, 4
        %s834 = scalar_lea.vmem %s3, %s833
      $region52: #{conv_bn_relu_layer.2} parent=47 // pred_fallthru
        _
      // Predicated region
      $region53: #{conv_bn_relu_layer.2} parent=47 // pred_check
        %p835 = pneg %p158
      $region54: #{conv_bn_relu_layer.2} parent=47 // pred_check_branch
        %837 = sbr.rel (%p835) target = $region56
      $region55: #{conv_bn_relu_layer.2} parent=47 // pred_region
        %p838 = scmp.lt.s32.totalorder %s23, 1
        %s839 = scalar_select %p838, %s23, 1
        %p840 = scmp.lt.s32.totalorder %s24, 0
        %s841 = scalar_select %p840, %s24, 0
        %s842 = sadd.s32 %s841, %s839
        %s843 = smul.addr %s842, 8
        %s844 = scalar_lea.vmem %s4, %s843
      $region56: #{conv_bn_relu_layer.2} parent=47 // pred_fallthru
        _
      // Predicated region
      $region57: #{conv_bn_relu_layer.2} parent=47 // pred_check
        %p845 = pneg %p186
      $region58: #{conv_bn_relu_layer.2} parent=47 // pred_check_branch
        %847 = sbr.rel (%p845) target = $region60
      $region59: #{conv_bn_relu_layer.2} parent=47 // pred_region
        %p848 = scmp.lt.s32.totalorder %s23, 1
        %s849 = scalar_select %p848, %s23, 1
        %p850 = scmp.lt.s32.totalorder %s24, 0
        %s851 = scalar_select %p850, %s24, 0
        %s852 = sadd.s32 %s851, %s849
        %s853 = smul.addr %s852, 8
        %s854 = scalar_lea.vmem %s5, %s853
      $region60: #{conv_bn_relu_layer.2} parent=47 // pred_fallthru
        _
    $region48: #{conv_bn_relu_layer.2} parent=5 // pred_fallthru
      _
  $region6: #{conv_bn_relu_layer.2} parent=0 // loop_footer
    %s16 = sadd.s32 1, %s12
  $region7: #{conv_bn_relu_layer.2} parent=0 // loop_footer_branch
    %11 = sbr.rel target = $region3
  $region8: #{conv_bn_relu_layer.2} parent=0 // loop_exit
    _

</llo_original>
